<compile_context>
chip_gen: v7x
topology: tpu7x:2x2x1
jax: 0.10.0
libtpu: 0.0.40
codegen_flags: <defaults>
</compile_context>

<pallas_src>
import math
from typing import Any, NamedTuple

import jax
import jax.numpy as jnp
from jax.experimental import pallas as pl
from jax.experimental.pallas import tpu as pltpu


def _round_up(v, m):
    return (v + m - 1) // m * m


def _tpu_info():
    """(generation, per-core VMEM capacity bytes); conservative on unknowns."""
    kind = ""
    try:
        kind = (getattr(jax.devices()[0], "device_kind", "") or "").lower()
    except Exception:
        pass
    if "v7" in kind:
        return 7, 64 << 20
    if "v6" in kind:
        return 6, 128 << 20
    if "v5" in kind:
        return 5, 128 << 20
    if "v4" in kind:
        return 4, 128 << 20
    return 6, 64 << 20  # unknown: assume modern VPU, conservative VMEM


# --------------------------------------------------------------------------- #
# Kernels
# --------------------------------------------------------------------------- #
def _expanded_kernel(x_ref, plo_ref, phi_ref, w_ref, b_ref, o_ref):
    # x_ref:   (TB, D_pad)  lane-dense basis input (column n*G+gg carries x[:, n])
    # plo_ref: (1, D_pad)   flattened phase_low     (elementwise dtype)
    # phi_ref: (1, D_pad)   flattened phase_high
    # w_ref:   (D_pad, TO)  flattened conv weight (transposed), r^2 pre-folded
    # b_ref:   (1, TO)      conv bias (f32)
    # o_ref:   (TB, TO)     output tile
    x = x_ref[...]
    if x.dtype != plo_ref.dtype:
        x = x.astype(plo_ref.dtype)
    x1 = jnp.maximum(x - plo_ref[...], 0.0)          # relu(x - phase_low)
    x2 = jnp.maximum(phi_ref[...] - x, 0.0)          # relu(phase_high - x)
    p = x1 * x2
    p = p * p                                         # r^2 is folded into w_ref
    out = jnp.dot(p.astype(w_ref.dtype), w_ref[...],
                  preferred_element_type=jnp.float32)
    o_ref[...] = (out + b_ref[...]).astype(o_ref.dtype)


def _make_chunked_kernel(G):
    def kernel(x_ref, plo_ref, phi_ref, w_ref, b_ref, o_ref):
        # x_ref:   (TB, N_pad)      raw input tile (no host-side G expansion)
        # plo_ref: (G, N_pad)       g-major phase_low
        # phi_ref: (G, N_pad)       g-major phase_high
        # w_ref:   (G, N_pad, TO)   g-major weight slabs, r^2 pre-folded
        # b_ref:   (1, TO)
        # o_ref:   (TB, TO)
        x = x_ref[...]
        if x.dtype != plo_ref.dtype:
            x = x.astype(plo_ref.dtype)
        acc = jnp.zeros(o_ref.shape, jnp.float32)
        for gg in range(G):                           # static unroll; G = g + k small
            x1 = jnp.maximum(x - plo_ref[gg][None, :], 0.0)
            x2 = jnp.maximum(phi_ref[gg][None, :] - x, 0.0)
            p = x1 * x2
            p = p * p
            acc = acc + jnp.dot(p.astype(w_ref.dtype), w_ref[gg],
                                preferred_element_type=jnp.float32)
        o_ref[...] = (acc + b_ref[...]).astype(o_ref.dtype)
    return kernel


# --------------------------------------------------------------------------- #
# Parameter prep (hoisted out of the per-call path)
# --------------------------------------------------------------------------- #
class ReLUKANParams(NamedTuple):
    mode: str            # "expanded" | "chunked"
    plo: Any
    phi: Any
    w: Any
    b: Any
    N: int
    G: int
    O: int
    K_rows: int          # padded contraction cols per x tile (D_pad or N_pad)
    K_total: int         # total padded contraction length (D_pad or G*N_pad)
    O_pad: int
    matmul_dtype: Any
    ew_dtype: Any


def prepare_relu_kan_params(phase_low, phase_high, conv_w, conv_b, g, k, *,
                            matmul_dtype=jnp.bfloat16, mode=None):
    """One-time layout prep (per weight update); cache the result."""
    phase_low = jnp.asarray(phase_low, jnp.float32)
    phase_high = jnp.asarray(phase_high, jnp.float32)
    conv_w = jnp.asarray(conv_w, jnp.float32)
    conv_b = jnp.asarray(conv_b, jnp.float32)

    N, G = phase_low.shape
    assert G == g + k, "phase table must have g + k columns"
    O = conv_b.shape[0]
    D = N * G
    r = 4.0 * g * g / ((k + 1) * (k + 1))

    gen, _ = _tpu_info()
    is_bf16 = jnp.dtype(matmul_dtype) == jnp.dtype(jnp.bfloat16)
    # bf16 elementwise basis math only where the VPU has native bf16 (v6e/v7x).
    ew_dtype = jnp.dtype(jnp.bfloat16) if (is_bf16 and gen >= 6) else jnp.dtype(jnp.float32)

    if mode is None:
        # In-kernel expansion only pays off once N fills the 128-lane vregs;
        # for tiny N the per-shell padding waste dominates -> keep "expanded".
        mode = "chunked" if N >= 128 else "expanded"

    O_pad = _round_up(O, 128)
    # torch reshape (B,N,G)->(B,1,G,N) + Conv2d(G,N) <=> basis element (n,gg)
    # pairs with conv_w.reshape(O, D)[:, n*G + gg].  Fold r^2 into the weight.
    w_flat = conv_w.reshape(O, D) * (r * r)
    b_mat = jnp.pad(conv_b.reshape(1, O), ((0, 0), (0, O_pad - O)))

    if mode == "expanded":
        D_pad = _round_up(D, 128)
        plo = jnp.pad(phase_low.reshape(1, D), ((0, 0), (0, D_pad - D))).astype(ew_dtype)
        phi = jnp.pad(phase_high.reshape(1, D), ((0, 0), (0, D_pad - D))).astype(ew_dtype)
        w = jnp.pad(w_flat.T, ((0, D_pad - D), (0, O_pad - O))).astype(matmul_dtype)
        K_rows, K_total = D_pad, D_pad
    else:
        N_pad = _round_up(N, 128)
        plo = jnp.pad(phase_low.T, ((0, 0), (0, N_pad - N))).astype(ew_dtype)     # (G, N_pad)
        phi = jnp.pad(phase_high.T, ((0, 0), (0, N_pad - N))).astype(ew_dtype)
        w_g = jnp.transpose(w_flat.reshape(O, N, G), (2, 1, 0))                   # (G, N, O)
        w = jnp.pad(w_g, ((0, 0), (0, N_pad - N), (0, O_pad - O))).astype(matmul_dtype)
        K_rows, K_total = N_pad, G * N_pad

    return ReLUKANParams(mode, plo, phi, w, b_mat, N, G, O, K_rows, K_total,
                         O_pad, jnp.dtype(matmul_dtype), ew_dtype)


# --------------------------------------------------------------------------- #
# Forward
# --------------------------------------------------------------------------- #
_RESIDENT_SINGLE_BUFFER = True   # pl.Buffered(1) on resident operands; auto-disabled if rejected
_RESIDENT_SB_VERIFIED = False


def relu_kan_forward(x, params: ReLUKANParams, *, block_b=None, block_o=None,
                     out_dtype=None):
    global _RESIDENT_SINGLE_BUFFER, _RESIDENT_SB_VERIFIED

    if x.ndim == 3:
        x = jnp.squeeze(x, axis=-1)
    B, N = x.shape
    if N != params.N:
        raise ValueError(f"input_size mismatch: {N} vs {params.N}")
    out_dtype = jnp.dtype(out_dtype if out_dtype is not None else x.dtype)

    gen, vmem_cap = _tpu_info()
    budget = int(vmem_cap * 0.75)            # generation-aware cap (~48 MiB on v7x)

    G, O, O_pad = params.G, params.O, params.O_pad
    K_rows, K_total = params.K_rows, params.K_total
    chunked = params.mode == "chunked"

    stream_dtype = params.matmul_dtype       # bf16 x stream when the matmul is bf16
    x_item = jnp.dtype(stream_dtype).itemsize
    w_item = jnp.dtype(params.matmul_dtype).itemsize
    ew_item = jnp.dtype(params.ew_dtype).itemsize
    o_item = out_dtype.itemsize
    n_phase_rows = G if chunked else 1

    row_align = 16 if x_item < 4 else 8      # bf16 sublane packing
    if block_b is None:
        target = 512 if gen >= 6 else 256    # feed the 2x256^2 MXU / amortize step cost
        block_b = target if B >= target else _round_up(B, row_align)
    block_b = max(row_align, _round_up(block_b, row_align))

    def vmem_need(bb, to, single_buffer):
        resident_w = (to == O_pad) and single_buffer
        w_nbuf = 1 if resident_w else 2
        small_nbuf = 1 if single_buffer else 2
        return (K_total * to * w_item * w_nbuf                       # weight
                + 2 * n_phase_rows * K_rows * ew_item * small_nbuf   # phases
                + 2 * to * 4                                         # bias
                + 2 * bb * K_rows * x_item                           # x tiles (2 bufs)
                + 2 * bb * to * o_item)                              # out tiles (2 bufs)

    # ---- pick the O tile: largest 128-multiple divisor of O_pad that fits ----
    if block_o is not None:
        TO = min(O_pad, _round_up(block_o, 128))
        if O_pad % TO:
            raise ValueError("block_o must divide the 128-padded output size")
    else:
        units = O_pad // 128
        TO = 128
        for d in sorted((d for d in range(1, units + 1) if units % d == 0), reverse=True):
            if vmem_need(block_b, d * 128, _RESIDENT_SINGLE_BUFFER) <= budget:
                TO = d * 128
                break
    # ---- shrink the batch tile if the weight leaves no room -----------------
    while block_b > row_align and vmem_need(block_b, TO, _RESIDENT_SINGLE_BUFFER) > budget:
        block_b = max(row_align, _round_up(block_b // 2, row_align))

    B_pad = _round_up(B, block_b)
    # TODO(synk): padded batch rows compute (and write) garbage that is sliced
    # off below; a pl.when row-mask on the last batch step would save that.

    if chunked:
        x_in, K_valid = x, N
    else:
        x_in, K_valid = jnp.repeat(x, G, axis=1), N * G   # lane-dense basis (small N only)
    x_in = jnp.pad(x_in.astype(stream_dtype),
                   ((0, B_pad - B), (0, K_rows - K_valid)))

    num_o = O_pad // TO
    num_b = B_pad // block_b
    grid = (num_o, num_b)                    # O outermost: a too-big weight streams once
    weight_resident = num_o == 1
    kernel = _make_chunked_kernel(G) if chunked else _expanded_kernel

    cost = pl.CostEstimate(
        flops=int(2 * B_pad * K_total * O_pad + 6 * B_pad * K_total),
        transcendentals=0,
        bytes_accessed=int(x_in.size * x_item + params.w.size * w_item
                           + B_pad * O_pad * o_item),
    )

    def run(single_buffer):
        need = vmem_need(block_b, TO, single_buffer)
        vmem_limit = max(16 << 20, min(int(need * 1.5) + (4 << 20), budget))

        def spec(shape, index_map, resident):
            if resident and single_buffer:
                return pl.BlockSpec(shape, index_map, pipeline_mode=pl.Buffered(1))
            return pl.BlockSpec(shape, index_map)

        if chunked:
            plo_spec = spec((G, K_rows), lambda oi, bi: (0, 0), True)
            phi_spec = spec((G, K_rows), lambda oi, bi: (0, 0), True)
            w_spec = spec((G, K_rows, TO), lambda oi, bi: (0, 0, oi), weight_resident)
        else:
            plo_spec = spec((1, K_rows), lambda oi, bi: (0, 0), True)
            phi_spec = spec((1, K_rows), lambda oi, bi: (0, 0), True)
            w_spec = spec((K_rows, TO), lambda oi, bi: (0, oi), weight_resident)

        out = pl.pallas_call(
            kernel,
            out_shape=jax.ShapeDtypeStruct((B_pad, O_pad), out_dtype),
            grid=grid,
            in_specs=[
                pl.BlockSpec((block_b, K_rows), lambda oi, bi: (bi, 0)),   # x (streamed)
                plo_spec,                                                  # phase_low
                phi_spec,                                                  # phase_high
                w_spec,                                                    # weight
                spec((1, TO), lambda oi, bi: (0, oi), weight_resident),    # bias
            ],
            out_specs=pl.BlockSpec((block_b, TO), lambda oi, bi: (bi, oi)),
            compiler_params=pltpu.CompilerParams(
                dimension_semantics=("parallel", "parallel"),
                vmem_limit_bytes=vmem_limit,
            ),
            cost_estimate=cost,
        )(x_in, params.plo, params.phi, params.w, params.b)
        return out[:B, :O]

    if _RESIDENT_SINGLE_BUFFER and not _RESIDENT_SB_VERIFIED:
        try:
            out = jax.block_until_ready(run(True))
            _RESIDENT_SB_VERIFIED = True
            return out
        except Exception:
            _RESIDENT_SINGLE_BUFFER = False   # this build rejects Buffered(1): fall back
    return run(_RESIDENT_SINGLE_BUFFER)


# --------------------------------------------------------------------------- #
# Pure-JAX reference (replicates the PyTorch forward)
# --------------------------------------------------------------------------- #
def reference_forward(x, phase_low, phase_high, conv_w, conv_b, g, k):
    if x.ndim == 3:
        x = jnp.squeeze(x, axis=-1)
    B, N = x.shape
    r = 4.0 * g * g / ((k + 1) * (k + 1))
    xe = x[:, :, None]
    x1 = jax.nn.relu(xe - phase_low[None])
    x2 = jax.nn.relu(phase_high[None] - xe)
    phi = x1 * x2 * r
    phi = phi * phi
    phi = phi.reshape(B, 1, g + k, N)                 # same flat order as torch reshape
    return jnp.einsum("bchw,ochw->bo", phi, conv_w) + conv_b


# --------------------------------------------------------------------------- #
# Self-test
# --------------------------------------------------------------------------- #
if __name__ == "__main__":
    def init_layer(input_size, g, k, output_size, key):
        G = g + k
        phase_low_1d = jnp.arange(-k, g, dtype=jnp.float32) / g
        phase_high_1d = phase_low_1d + (k + 1) / g
        phase_low = jnp.broadcast_to(phase_low_1d[None, :], (input_size, G))
        phase_high = jnp.broadcast_to(phase_high_1d[None, :], (input_size, G))
        bound = 1.0 / math.sqrt(G * input_size)
        kw, kb = jax.random.split(key)
        conv_w = jax.random.uniform(kw, (output_size, 1, G, input_size),
                                    jnp.float32, -bound, bound)
        conv_b = jax.random.uniform(kb, (output_size,), jnp.float32, -bound, bound)
        return phase_low, phase_high, conv_w, conv_b

    def rel_err(a, b):
        return float(jnp.max(jnp.abs(a - b)) / (jnp.max(jnp.abs(b)) + 1e-6))

    key = jax.random.PRNGKey(0)
    cases = [
        # small N -> host-expanded lane-dense path, multi-step batch grid
        dict(input_size=12, g=5, k=3, output_size=32, batch=48, block_b=16, block_o=None),
        # N = 128 -> in-kernel (chunked) expansion path, O-tiled grid
        dict(input_size=128, g=5, k=3, output_size=256, batch=64, block_b=None, block_o=128),
    ]
    for c in cases:
        key, kp, kx = jax.random.split(key, 3)
        phase_low, phase_high, conv_w, conv_b = init_layer(
            c["input_size"], c["g"], c["k"], c["output_size"], kp)
        x = jax.random.normal(kx, (c["batch"], c["input_size"], 1), jnp.float32)
        ref = reference_forward(x, phase_low, phase_high, conv_w, conv_b, c["g"], c["k"])

        # Exact-semantics check: f32 operands end to end.
        p32 = prepare_relu_kan_params(phase_low, phase_high, conv_w, conv_b,
                                      c["g"], c["k"], matmul_dtype=jnp.float32)
        out32 = jax.block_until_ready(
            relu_kan_forward(x, p32, block_b=c["block_b"], block_o=c["block_o"]))
        assert out32.shape == (c["batch"], c["output_size"])
        assert rel_err(out32, ref) < 1e-4, f"f32 mismatch: {rel_err(out32, ref)}"

        # Default fast path: bf16 streamed x / weight, f32 MXU accumulation.
        pbf = prepare_relu_kan_params(phase_low, phase_high, conv_w, conv_b,
                                      c["g"], c["k"])
        outbf = jax.block_until_ready(
            relu_kan_forward(x, pbf, block_b=c["block_b"], block_o=c["block_o"]))
        assert outbf.shape == (c["batch"], c["output_size"])
        assert rel_err(outbf, ref) < 4e-2, f"bf16 mismatch: {rel_err(outbf, ref)}"

    print("KERNEL_OK")
</pallas_src>

<mosaic_0001>
module attributes {stable_mosaic.version = 11 : i64} {
  func.func @_expanded_kernel(%arg0: i32, %arg1: i32, %arg2: memref<16x128xf32, #tpu.memory_space<vmem>>, %arg3: memref<1x128xf32, #tpu.memory_space<vmem>>, %arg4: memref<1x128xf32, #tpu.memory_space<vmem>>, %arg5: memref<128x128xf32, #tpu.memory_space<vmem>>, %arg6: memref<1x128xf32, #tpu.memory_space<vmem>>, %arg7: memref<16x128xf32, #tpu.memory_space<vmem>>) attributes {dimension_semantics = [#tpu.dimension_semantics<parallel>, #tpu.dimension_semantics<parallel>], iteration_bounds = array<i64: 1, 3>, scalar_prefetch = 0 : i64, scratch_operands = 0 : i64, tpu.core_type = #tpu.core_type<tc>, window_params = [{transform_indices = @transform_0, window_bounds = array<i64: 16, 128>}, {pipeline_mode = #tpu.pipeline_mode<synchronous>, transform_indices = @transform_1, window_bounds = array<i64: 1, 128>}, {pipeline_mode = #tpu.pipeline_mode<synchronous>, transform_indices = @transform_2, window_bounds = array<i64: 1, 128>}, {pipeline_mode = #tpu.pipeline_mode<synchronous>, transform_indices = @transform_3, window_bounds = array<i64: 128, 128>}, {pipeline_mode = #tpu.pipeline_mode<synchronous>, transform_indices = @transform_4, window_bounds = array<i64: 1, 128>}, {transform_indices = @transform_5, window_bounds = array<i64: 16, 128>}]} {
    %c0 = arith.constant 0 : index
    %c0_0 = arith.constant 0 : index
    %0 = vector.load %arg2[%c0, %c0_0] : memref<16x128xf32, #tpu.memory_space<vmem>>, vector<16x128xf32>
    %c0_1 = arith.constant 0 : index
    %c0_2 = arith.constant 0 : index
    %1 = vector.load %arg3[%c0_1, %c0_2] : memref<1x128xf32, #tpu.memory_space<vmem>>, vector<1x128xf32>
    %2 = vector.broadcast %1 : vector<1x128xf32> to vector<16x128xf32>
    %3 = arith.subf %0, %2 : vector<16x128xf32>
    %cst = arith.constant 0.000000e+00 : f32
    %4 = vector.broadcast %cst : f32 to vector<16x128xf32>
    %5 = arith.maximumf %3, %4 : vector<16x128xf32>
    %c0_3 = arith.constant 0 : index
    %c0_4 = arith.constant 0 : index
    %6 = vector.load %arg4[%c0_3, %c0_4] : memref<1x128xf32, #tpu.memory_space<vmem>>, vector<1x128xf32>
    %7 = vector.broadcast %6 : vector<1x128xf32> to vector<16x128xf32>
    %8 = arith.subf %7, %0 : vector<16x128xf32>
    %cst_5 = arith.constant 0.000000e+00 : f32
    %9 = vector.broadcast %cst_5 : f32 to vector<16x128xf32>
    %10 = arith.maximumf %8, %9 : vector<16x128xf32>
    %11 = arith.mulf %5, %10 : vector<16x128xf32>
    %12 = arith.mulf %11, %11 : vector<16x128xf32>
    %c0_6 = arith.constant 0 : index
    %c0_7 = arith.constant 0 : index
    %13 = vector.load %arg5[%c0_6, %c0_7] : memref<128x128xf32, #tpu.memory_space<vmem>>, vector<128x128xf32>
    %cst_8 = arith.constant dense<0.000000e+00> : vector<16x128xf32>
    %14 = tpu.matmul %12, %13, %cst_8 {dimension_numbers = #tpu.dot_dimension_numbers<[1], [0], [0], [1], [0, 0, 1, 1], [], []>} : vector<16x128xf32>, vector<128x128xf32>, vector<16x128xf32> -> vector<16x128xf32>
    %c0_9 = arith.constant 0 : index
    %c0_10 = arith.constant 0 : index
    %15 = vector.load %arg6[%c0_9, %c0_10] : memref<1x128xf32, #tpu.memory_space<vmem>>, vector<1x128xf32>
    %16 = vector.broadcast %15 : vector<1x128xf32> to vector<16x128xf32>
    %17 = arith.addf %14, %16 : vector<16x128xf32>
    %c0_11 = arith.constant 0 : index
    %c0_12 = arith.constant 0 : index
    %18 = vector.load %arg7[%c0_11, %c0_12] : memref<16x128xf32, #tpu.memory_space<vmem>>, vector<16x128xf32>
    tpu.vector_store %arg7[%c0_11, %c0_12], %17 {strides = array<i32>} : memref<16x128xf32, #tpu.memory_space<vmem>>, vector<16x128xf32>,
    return
  }
  func.func @transform_0(%arg0: i32, %arg1: i32) -> (i32, i32) {
    %c0_i32 = arith.constant 0 : i32
    %c0_i32_0 = arith.constant 0 : i32
    return %arg1, %c0_i32 : i32, i32
  }
  func.func @transform_1(%arg0: i32, %arg1: i32) -> (i32, i32) {
    %c0_i32 = arith.constant 0 : i32
    %c0_i32_0 = arith.constant 0 : i32
    %c0_i32_1 = arith.constant 0 : i32
    return %c0_i32, %c0_i32_0 : i32, i32
  }
  func.func @transform_2(%arg0: i32, %arg1: i32) -> (i32, i32) {
    %c0_i32 = arith.constant 0 : i32
    %c0_i32_0 = arith.constant 0 : i32
    %c0_i32_1 = arith.constant 0 : i32
    return %c0_i32, %c0_i32_0 : i32, i32
  }
  func.func @transform_3(%arg0: i32, %arg1: i32) -> (i32, i32) {
    %c0_i32 = arith.constant 0 : i32
    %c0_i32_0 = arith.constant 0 : i32
    return %c0_i32, %arg0 : i32, i32
  }
  func.func @transform_4(%arg0: i32, %arg1: i32) -> (i32, i32) {
    %c0_i32 = arith.constant 0 : i32
    %c0_i32_0 = arith.constant 0 : i32
    return %c0_i32, %arg0 : i32, i32
  }
  func.func @transform_5(%arg0: i32, %arg1: i32) -> (i32, i32) {
    %c0_i32 = arith.constant 0 : i32
    return %arg1, %arg0 : i32, i32
  }
}

module attributes {stable_mosaic.version = 11 : i64} {
  func.func @_expanded_kernel(%arg0: i32, %arg1: i32, %arg2: memref<16x128xf32, #tpu.memory_space<vmem>>, %arg3: memref<1x128xf32, #tpu.memory_space<vmem>>, %arg4: memref<1x128xf32, #tpu.memory_space<vmem>>, %arg5: memref<128x128xf32, #tpu.memory_space<vmem>>, %arg6: memref<1x128xf32, #tpu.memory_space<vmem>>, %arg7: memref<16x128xf32, #tpu.memory_space<vmem>>) attributes {dimension_semantics = [#tpu.dimension_semantics<parallel>, #tpu.dimension_semantics<parallel>], iteration_bounds = array<i64: 1, 3>, scalar_prefetch = 0 : i64, scratch_operands = 0 : i64, tpu.core_type = #tpu.core_type<tc>, window_params = [{transform_indices = @transform_0, window_bounds = array<i64: 16, 128>}, {pipeline_mode = #tpu.pipeline_mode<synchronous>, transform_indices = @transform_1, window_bounds = array<i64: 1, 128>}, {pipeline_mode = #tpu.pipeline_mode<synchronous>, transform_indices = @transform_2, window_bounds = array<i64: 1, 128>}, {transform_indices = @transform_3, window_bounds = array<i64: 128, 128>}, {transform_indices = @transform_4, window_bounds = array<i64: 1, 128>}, {transform_indices = @transform_5, window_bounds = array<i64: 16, 128>}]} {
    %c0 = arith.constant 0 : index
    %c0_0 = arith.constant 0 : index
    %0 = vector.load %arg2[%c0, %c0_0] : memref<16x128xf32, #tpu.memory_space<vmem>>, vector<16x128xf32>
    %c0_1 = arith.constant 0 : index
    %c0_2 = arith.constant 0 : index
    %1 = vector.load %arg3[%c0_1, %c0_2] : memref<1x128xf32, #tpu.memory_space<vmem>>, vector<1x128xf32>
    %2 = vector.broadcast %1 : vector<1x128xf32> to vector<16x128xf32>
    %3 = arith.subf %0, %2 : vector<16x128xf32>
    %cst = arith.constant 0.000000e+00 : f32
    %4 = vector.broadcast %cst : f32 to vector<16x128xf32>
    %5 = arith.maximumf %3, %4 : vector<16x128xf32>
    %c0_3 = arith.constant 0 : index
    %c0_4 = arith.constant 0 : index
    %6 = vector.load %arg4[%c0_3, %c0_4] : memref<1x128xf32, #tpu.memory_space<vmem>>, vector<1x128xf32>
    %7 = vector.broadcast %6 : vector<1x128xf32> to vector<16x128xf32>
    %8 = arith.subf %7, %0 : vector<16x128xf32>
    %cst_5 = arith.constant 0.000000e+00 : f32
    %9 = vector.broadcast %cst_5 : f32 to vector<16x128xf32>
    %10 = arith.maximumf %8, %9 : vector<16x128xf32>
    %11 = arith.mulf %5, %10 : vector<16x128xf32>
    %12 = arith.mulf %11, %11 : vector<16x128xf32>
    %c0_6 = arith.constant 0 : index
    %c0_7 = arith.constant 0 : index
    %13 = vector.load %arg5[%c0_6, %c0_7] : memref<128x128xf32, #tpu.memory_space<vmem>>, vector<128x128xf32>
    %cst_8 = arith.constant dense<0.000000e+00> : vector<16x128xf32>
    %14 = tpu.matmul %12, %13, %cst_8 {dimension_numbers = #tpu.dot_dimension_numbers<[1], [0], [0], [1], [0, 0, 1, 1], [], []>} : vector<16x128xf32>, vector<128x128xf32>, vector<16x128xf32> -> vector<16x128xf32>
    %c0_9 = arith.constant 0 : index
    %c0_10 = arith.constant 0 : index
    %15 = vector.load %arg6[%c0_9, %c0_10] : memref<1x128xf32, #tpu.memory_space<vmem>>, vector<1x128xf32>
    %16 = vector.broadcast %15 : vector<1x128xf32> to vector<16x128xf32>
    %17 = arith.addf %14, %16 : vector<16x128xf32>
    %c0_11 = arith.constant 0 : index
    %c0_12 = arith.constant 0 : index
    %18 = vector.load %arg7[%c0_11, %c0_12] : memref<16x128xf32, #tpu.memory_space<vmem>>, vector<16x128xf32>
    tpu.vector_store %arg7[%c0_11, %c0_12], %17 {strides = array<i32>} : memref<16x128xf32, #tpu.memory_space<vmem>>, vector<16x128xf32>,
    return
  }
  func.func @transform_0(%arg0: i32, %arg1: i32) -> (i32, i32) {
    %c0_i32 = arith.constant 0 : i32
    %c0_i32_0 = arith.constant 0 : i32
    return %arg1, %c0_i32 : i32, i32
  }
  func.func @transform_1(%arg0: i32, %arg1: i32) -> (i32, i32) {
    %c0_i32 = arith.constant 0 : i32
    %c0_i32_0 = arith.constant 0 : i32
    %c0_i32_1 = arith.constant 0 : i32
    return %c0_i32, %c0_i32_0 : i32, i32
  }
  func.func @transform_2(%arg0: i32, %arg1: i32) -> (i32, i32) {
    %c0_i32 = arith.constant 0 : i32
    %c0_i32_0 = arith.constant 0 : i32
    %c0_i32_1 = arith.constant 0 : i32
    return %c0_i32, %c0_i32_0 : i32, i32
  }
  func.func @transform_3(%arg0: i32, %arg1: i32) -> (i32, i32) {
    %c0_i32 = arith.constant 0 : i32
    %c0_i32_0 = arith.constant 0 : i32
    return %c0_i32, %arg0 : i32, i32
  }
  func.func @transform_4(%arg0: i32, %arg1: i32) -> (i32, i32) {
    %c0_i32 = arith.constant 0 : i32
    %c0_i32_0 = arith.constant 0 : i32
    return %c0_i32, %arg0 : i32, i32
  }
  func.func @transform_5(%arg0: i32, %arg1: i32) -> (i32, i32) {
    %c0_i32 = arith.constant 0 : i32
    return %arg1, %arg0 : i32, i32
  }
}

</mosaic_0001>

<llo_original>
// kernel: tpu_custom_call.1
$region0: #{tpu_custom_call.1}
  #allocation0 [shape = 'u32[]', space=smem, size = 0x4, offset = 0x4, fixed_abs, tag = 'smem constant byte address 0x4 - core index']
  #allocation1 [shape = 'u32[144,128]{1,0:T(1,128)}', space=vmem, size = 0x12000, scoped, tag = 'internal scratch']
  %s0 = inlined_call_operand.hbm [shape: f32[48,128], index: 0, kind: input, shape index: {}]
  %s1 = inlined_call_operand.vmem [shape: f32[1,128], index: 1, kind: input, shape index: {}]
  %s2 = inlined_call_operand.vmem [shape: f32[1,128], index: 2, kind: input, shape index: {}]
  %s3 = inlined_call_operand.hbm [shape: f32[128,128], index: 3, kind: input, shape index: {}]
  %s4 = inlined_call_operand.vmem [shape: f32[1,128], index: 4, kind: input, shape index: {}]
  %s5 = inlined_call_operand.hbm [shape: f32[48,128], index: 5, kind: output, shape index: {}]
  %s6 = sld [smem:[#allocation0]]
  $region61: #{tpu_custom_call.1} parent=0
    _
  %s8 = ssub.s32 1, %s6
  %s9 = scalar_select 0, %s8, %s6
  $region1: #{tpu_custom_call.1} parent=0
    #allocation2 [shape = 'u8[16384]{0}', space=vmem, size = 0x4000, scoped, tag = 'input window, operand 0']
    #allocation3 [shape = 's32[2]{0}', space=sflag, size = 0x8, scoped, tag = 'scoped memory for tpu_custom_call.1']
    #allocation4 [shape = 's32[2]{0}', space=sflag, size = 0x8, scoped, tag = 'scoped memory for tpu_custom_call.1']
    #allocation5 [shape = 'u8[65536]{0}', space=vmem, size = 0x10000, scoped, tag = 'input window, operand 3, single buffered']
    #allocation6 [shape = 's32[1]{0}', space=sflag, size = 0x4, scoped, tag = 'scoped memory for tpu_custom_call.1']
    #allocation7 [shape = 'u8[16384]{0}', space=vmem, size = 0x4000, scoped, tag = 'output window, operand 0']
    %10 = vsyncpa [#allocation3], 0
    %s11 = scalar_lea.sflag [#allocation3], 1
    %12 = vsyncpa %s11, 0
    %13 = vsyncpa [#allocation6], 0
    %14 = vsyncpa [#allocation4], 0
    %s15 = scalar_lea.sflag [#allocation4], 1
    %16 = vsyncpa %s15, 0
    loop: start=0, step=1, limit=5
    $region2: #{tpu_custom_call.1} parent=1 // loop_pre_header
      _
    $region3: #{tpu_custom_call.1} parent=1 // loop_header
      %s18 = sphi 0, %s22
      %p19 = scmp.ge.s32.totalorder %s18, 5
      %s25 = sphi 0, %s37
      %s26 = sphi 0, %s33
      %s27 = sphi 0, %s25
      %s28 = sphi 0, %s26
      %s29 = sphi 0, %s27
      %s30 = sphi 0, %s28
      %s40 = sphi 0, %s42
      %s43 = sphi 0, %s40
      %s44 = sphi 0, %s43
      %s60 = sphi 0, %s44
      %s64 = sphi 0, %s64
      %s66 = sphi 0, %s64
      %s67 = sphi 0, %s66
      %s81 = sphi 0, %s67
      %s85 = sphi 0, %s85
      %s87 = sphi 0, %s85
      %s88 = sphi 0, %s87
      %s102 = sphi 0, %s88
      %s108 = sphi 0, %s110
      %s111 = sphi 0, %s108
      %s112 = sphi 0, %s111
      %s128 = sphi 0, %s112
      %s134 = sphi 0, %s136
      %s137 = sphi 0, %s134
      %s138 = sphi 0, %s137
      %s154 = sphi 0, %s138
      %s162 = sphi 0, %s164
      %s165 = sphi 0, %s162
      %s166 = sphi 0, %s165
      %s182 = sphi 0, %s166
    $region4: #{tpu_custom_call.1} parent=1 // loop_header_branch
      %21 = sbr.rel (%p19) target = $region8
    $region5: #{tpu_custom_call.1} parent=1 // loop_body
      %s23 = ssub.s32 %s18, 1
      %s24 = ssub.s32 %s18, 2
      %s31 = sadd.s32 1, %s26
      %p32 = scmp.ge.s32.totalorder %s31, 3
      %s33 = scalar_select %p32, 0, %s31
      %s34 = sadd.s32 1, %s25
      %s35 = scalar_select %p32, %s34, %s25
      %p36 = scmp.ge.s32.totalorder %s35, 1
      %s37 = scalar_select %p36, 0, %s35
      %s38 = ssub.s32 %s26, %s33
      %p39 = scmp.eq.s32.totalorder %s38, 0
      %s41 = sadd.s32 %s40, 1
      %s42 = scalar_select %p39, %s40, %s41
      %p45 = pneg %p39
      %p46 = scmp.eq.s32.totalorder %s18, 2
      %p47 = por %p45, %p46
      %p48 = scmp.ne.s32.totalorder %s40, %s43
      %p49 = scmp.eq.s32.totalorder %s18, 0
      %p50 = por %p48, %p49
      %p51 = scmp.ne.s32.totalorder %s40, %s43
      %p52 = scmp.eq.s32.totalorder %s23, 2
      %p53 = por %p51, %p52
      %p54 = scmp.ne.s32.totalorder %s43, %s44
      %p55 = scmp.eq.s32.totalorder %s23, 0
      %p56 = por %p54, %p55
      %p57 = scmp.ne.s32.totalorder %s43, %s44
      %p58 = scmp.eq.s32.totalorder %s24, 2
      %p59 = por %p57, %p58
      %p61 = scmp.ne.s32.totalorder %s44, %s60
      %p62 = scmp.eq.s32.totalorder %s24, 0
      %p63 = por %p61, %p62
      %s65 = sadd.s32 %s64, 1
      %p68 = scmp.eq.s32.totalorder %s18, 2
      %p69 = scmp.ne.s32.totalorder %s64, %s66
      %p70 = scmp.eq.s32.totalorder %s18, 0
      %p71 = por %p69, %p70
      %p72 = scmp.ne.s32.totalorder %s64, %s66
      %p73 = scmp.eq.s32.totalorder %s23, 2
      %p74 = por %p72, %p73
      %p75 = scmp.ne.s32.totalorder %s66, %s67
      %p76 = scmp.eq.s32.totalorder %s23, 0
      %p77 = por %p75, %p76
      %p78 = scmp.ne.s32.totalorder %s66, %s67
      %p79 = scmp.eq.s32.totalorder %s24, 2
      %p80 = por %p78, %p79
      %p82 = scmp.ne.s32.totalorder %s67, %s81
      %p83 = scmp.eq.s32.totalorder %s24, 0
      %p84 = por %p82, %p83
      %s86 = sadd.s32 %s85, 1
      %p89 = scmp.eq.s32.totalorder %s18, 2
      %p90 = scmp.ne.s32.totalorder %s85, %s87
      %p91 = scmp.eq.s32.totalorder %s18, 0
      %p92 = por %p90, %p91
      %p93 = scmp.ne.s32.totalorder %s85, %s87
      %p94 = scmp.eq.s32.totalorder %s23, 2
      %p95 = por %p93, %p94
      %p96 = scmp.ne.s32.totalorder %s87, %s88
      %p97 = scmp.eq.s32.totalorder %s23, 0
      %p98 = por %p96, %p97
      %p99 = scmp.ne.s32.totalorder %s87, %s88
      %p100 = scmp.eq.s32.totalorder %s24, 2
      %p101 = por %p99, %p100
      %p103 = scmp.ne.s32.totalorder %s88, %s102
      %p104 = scmp.eq.s32.totalorder %s24, 0
      %p105 = por %p103, %p104
      %s106 = ssub.s32 %s25, %s37
      %p107 = scmp.eq.s32.totalorder %s106, 0
      %s109 = sadd.s32 %s108, 1
      %s110 = scalar_select %p107, %s108, %s109
      %p113 = pneg %p107
      %p114 = scmp.eq.s32.totalorder %s18, 2
      %p115 = por %p113, %p114
      %p116 = scmp.ne.s32.totalorder %s108, %s111
      %p117 = scmp.eq.s32.totalorder %s18, 0
      %p118 = por %p116, %p117
      %p119 = scmp.ne.s32.totalorder %s108, %s111
      %p120 = scmp.eq.s32.totalorder %s23, 2
      %p121 = por %p119, %p120
      %p122 = scmp.ne.s32.totalorder %s111, %s112
      %p123 = scmp.eq.s32.totalorder %s23, 0
      %p124 = por %p122, %p123
      %p125 = scmp.ne.s32.totalorder %s111, %s112
      %p126 = scmp.eq.s32.totalorder %s24, 2
      %p127 = por %p125, %p126
      %p129 = scmp.ne.s32.totalorder %s112, %s128
      %p130 = scmp.eq.s32.totalorder %s24, 0
      %p131 = por %p129, %p130
      %s132 = ssub.s32 %s25, %s37
      %p133 = scmp.eq.s32.totalorder %s132, 0
      %s135 = sadd.s32 %s134, 1
      %s136 = scalar_select %p133, %s134, %s135
      %p139 = pneg %p133
      %p140 = scmp.eq.s32.totalorder %s18, 2
      %p141 = por %p139, %p140
      %p142 = scmp.ne.s32.totalorder %s134, %s137
      %p143 = scmp.eq.s32.totalorder %s18, 0
      %p144 = por %p142, %p143
      %p145 = scmp.ne.s32.totalorder %s134, %s137
      %p146 = scmp.eq.s32.totalorder %s23, 2
      %p147 = por %p145, %p146
      %p148 = scmp.ne.s32.totalorder %s137, %s138
      %p149 = scmp.eq.s32.totalorder %s23, 0
      %p150 = por %p148, %p149
      %p151 = scmp.ne.s32.totalorder %s137, %s138
      %p152 = scmp.eq.s32.totalorder %s24, 2
      %p153 = por %p151, %p152
      %p155 = scmp.ne.s32.totalorder %s138, %s154
      %p156 = scmp.eq.s32.totalorder %s24, 0
      %p157 = por %p155, %p156
      %s158 = ssub.s32 %s26, %s33
      %s159 = ssub.s32 %s25, %s37
      %s160 = sor.u32 %s158, %s159
      %p161 = scmp.eq.s32.totalorder %s160, 0
      %s163 = sadd.s32 %s162, 1
      %s164 = scalar_select %p161, %s162, %s163
      %p167 = pneg %p161
      %p168 = scmp.eq.s32.totalorder %s18, 2
      %p169 = por %p167, %p168
      %p170 = scmp.ne.s32.totalorder %s162, %s165
      %p171 = scmp.eq.s32.totalorder %s18, 0
      %p172 = por %p170, %p171
      %p173 = scmp.ne.s32.totalorder %s162, %s165
      %p174 = scmp.eq.s32.totalorder %s23, 2
      %p175 = por %p173, %p174
      %p176 = scmp.ne.s32.totalorder %s165, %s166
      %p177 = scmp.eq.s32.totalorder %s23, 0
      %p178 = por %p176, %p177
      %p179 = scmp.ne.s32.totalorder %s165, %s166
      %p180 = scmp.eq.s32.totalorder %s24, 2
      %p181 = por %p179, %p180
      %p183 = scmp.ne.s32.totalorder %s166, %s182
      %p184 = scmp.eq.s32.totalorder %s24, 0
      %p185 = por %p183, %p184
      %p186 = scmp.le.s32.totalorder 1, %s18
      %p187 = scmp.lt.s32.totalorder %s18, 4
      %p188 = pnand %p186, %p187
      %p189 = pneg %p188
      // Predicated region
      $region9: #{tpu_custom_call.1} parent=5 // pred_check
        _
      $region10: #{tpu_custom_call.1} parent=5 // pred_check_branch
        %191 = sbr.rel (%p188) target = $region12
      $region11: #{tpu_custom_call.1} parent=5 // pred_region
        %s192 = ssub.s32 %s18, 1
        // Predicated region
        $region13: #{tpu_custom_call.1} parent=11 // pred_check
          %p193 = pneg %p77
        $region14: #{tpu_custom_call.1} parent=11 // pred_check_branch
          %195 = sbr.rel (%p193) target = $region16
        $region15: #{tpu_custom_call.1} parent=11 // pred_region
          _
        $region16: #{tpu_custom_call.1} parent=11 // pred_fallthru
          _
        // Predicated region
        $region17: #{tpu_custom_call.1} parent=11 // pred_check
          %p196 = pneg %p98
        $region18: #{tpu_custom_call.1} parent=11 // pred_check_branch
          %198 = sbr.rel (%p196) target = $region20
        $region19: #{tpu_custom_call.1} parent=11 // pred_region
          _
        $region20: #{tpu_custom_call.1} parent=11 // pred_fallthru
          _
        // Predicated region
        $region21: #{tpu_custom_call.1} parent=11 // pred_check
          %p199 = pneg %p124
        $region22: #{tpu_custom_call.1} parent=11 // pred_check_branch
          %201 = sbr.rel (%p199) target = $region24
        $region23: #{tpu_custom_call.1} parent=11 // pred_region
          %s203 = ssub.s32 2048, 2048
          %204 = vsyncadd [#allocation6], %s203
          %s205 = smul.addr %s27, 128
          %s206 = scalar_lea.hbm %s3, %s205
          %s207 = sshll.u32 [#allocation5], 4
          %s208 = int_to_ptr.vmem [resolvable:$true] %s207
          %213 = dma.hbm_to_vmem [thread:$0]  %s206, 2048, %s208, [#allocation6], 128, 128, 8
        $region24: #{tpu_custom_call.1} parent=11 // pred_fallthru
          _
        // Predicated region
        $region25: #{tpu_custom_call.1} parent=11 // pred_check
          %p214 = pneg %p150
        $region26: #{tpu_custom_call.1} parent=11 // pred_check_branch
          %216 = sbr.rel (%p214) target = $region28
        $region27: #{tpu_custom_call.1} parent=11 // pred_region
          %p217 = scmp.lt.s32.totalorder %s27, 0
          %s218 = scalar_select %p217, %s27, 0
          %s219 = scalar_lea.vmem %s4, %s218
        $region28: #{tpu_custom_call.1} parent=11 // pred_fallthru
          _
      $region12: #{tpu_custom_call.1} parent=5 // pred_fallthru
        _
      %p220 = scmp.lt.s32.totalorder %s18, 3
      // Predicated region
      $region29: #{tpu_custom_call.1} parent=5 // pred_check
        %p221 = pneg %p220
      $region30: #{tpu_custom_call.1} parent=5 // pred_check_branch
        %223 = sbr.rel (%p221) target = $region32
      $region31: #{tpu_custom_call.1} parent=5 // pred_region
        // Predicated region
        $region33: #{tpu_custom_call.1} parent=31 // pred_check
          %p224 = pneg %p50
        $region34: #{tpu_custom_call.1} parent=31 // pred_check_branch
          %226 = sbr.rel (%p224) target = $region36
        $region35: #{tpu_custom_call.1} parent=31 // pred_region
          %s227 = sand.u32 %s40, 1
          %s228 = scalar_lea.sflag [#allocation3], %s227
          %s229 = sand.u32 %s40, 1
          %s230 = smul.addr %s229, 16
          %s231 = scalar_lea.vmem [#allocation2], %s230
          %s232 = smul.u32 2, %s26
          %s234 = ssub.s32 256, 256
          %235 = vsyncadd %s228, %s234
          %s236 = smul.addr %s232, 128
          %s237 = scalar_lea.hbm %s0, %s236
          %s238 = sshll.u32 %s231, 4
          %s239 = int_to_ptr.vmem [resolvable:$true] %s238
          %244 = dma.hbm_to_vmem [thread:$0]  %s237, 256, %s239, %s228, 128, 128, 8
        $region36: #{tpu_custom_call.1} parent=31 // pred_fallthru
          _
      $region32: #{tpu_custom_call.1} parent=5 // pred_fallthru
        _
      %p245 = scmp.le.s32.totalorder 1, %s18
      %p246 = scmp.lt.s32.totalorder %s18, 4
      %p247 = pnand %p245, %p246
      %p248 = pneg %p247
      // Predicated region
      $region37: #{tpu_custom_call.1} parent=5 // pred_check
        _
      $region38: #{tpu_custom_call.1} parent=5 // pred_check_branch
        %250 = sbr.rel (%p247) target = $region40
      $region39: #{tpu_custom_call.1} parent=5 // pred_region
        %s251 = ssub.s32 %s18, 1
        %s252 = sand.u32 %s43, 1
        %s253 = scalar_lea.sflag [#allocation3], %s252
        %s254 = sand.u32 %s43, 1
        %s255 = smul.addr %s254, 16
        %s256 = scalar_lea.vmem [#allocation2], %s255
        // Predicated region
        $region41: #{tpu_custom_call.1} parent=39 // pred_check
          %p257 = pneg %p56
        $region42: #{tpu_custom_call.1} parent=39 // pred_check_branch
          %259 = sbr.rel (%p257) target = $region44
        $region43: #{tpu_custom_call.1} parent=39 // pred_region
          %260 = dma.done %s253, 256
        $region44: #{tpu_custom_call.1} parent=39 // pred_fallthru
          _
        // Predicated region
        $region45: #{tpu_custom_call.1} parent=39 // pred_check
          %p261 = pneg %p124
        $region46: #{tpu_custom_call.1} parent=39 // pred_check_branch
          %263 = sbr.rel (%p261) target = $region48
        $region47: #{tpu_custom_call.1} parent=39 // pred_region
          %264 = dma.done [#allocation6], 2048
        $region48: #{tpu_custom_call.1} parent=39 // pred_fallthru
          _
        %s265 = sand.u32 %s43, 1
        %s266 = scalar_lea.sflag [#allocation3], %s265
        %s267 = sand.u32 %s43, 1
        %s268 = smul.addr %s267, 16
        %s269 = scalar_lea.vmem [#allocation2], %s268
        %p270 = pneg %p56
        %p271 = pneg %p53
        %p272 = pneg %p77
        %p273 = pneg %p74
        %p274 = pneg %p98
        %p275 = pneg %p95
        %p276 = pneg %p124
        %p277 = pneg %p121
        %p278 = scmp.lt.s32.totalorder %s27, 0
        %s279 = scalar_select %p278, %s27, 0
        %s280 = scalar_lea.vmem %s4, %s279
        %p281 = pneg %p150
        %p282 = pneg %p147
        %p283 = pneg %p178
        %p284 = pneg %p175
        %s285 = sand.u32 %s165, 1
        %s286 = scalar_lea.sflag [#allocation4], %s285
        %s287 = sand.u32 %s165, 1
        %s288 = smul.addr %s287, 16
        %s289 = scalar_lea.vmem [#allocation7], %s288
        %s290 = smul.u32 2, %s28
        %p291 = scmp.lt.s32.totalorder %s27, 0
        %s292 = scalar_select %p291, %s27, 0
        %s293 = scalar_lea.vmem %s4, %s292
        %s294 = smul.u32 2, %s28
        %v295 = vld [vmem:[%s256] sm:$0xff]
        %v296 = vld [vmem:[%s256 + $0x8] sm:$0xff]
        %v297 = vld [vmem:[%s1] sm:$0x1]
        %v299 = vlaneseq
        %v300 = vshrl.u32 %v299, 7
        %v301 = vsub.s32 0, %v300
        %v302 = vrot.slane %v297, %v301
        %v304 = vsub.f32 %v295, %v302
        %v305 = vsub.f32 %v296, %v302
        %v306 = vmax.f32 %v304, 0.0
        %v307 = vmax.f32 %v305, 0.0
        %v308 = vld [vmem:[%s2] sm:$0x1]
        %v310 = vlaneseq
        %v311 = vshrl.u32 %v310, 7
        %v312 = vsub.s32 0, %v311
        %v313 = vrot.slane %v308, %v312
        %v315 = vsub.f32 %v313, %v295
        %v316 = vsub.f32 %v313, %v296
        %v317 = vmax.f32 %v315, 0.0
        %v318 = vmax.f32 %v316, 0.0
        %v319 = vmul.f32 %v306, %v317
        %v320 = vmul.f32 %v307, %v318
        %v321 = vmul.f32 %v319, %v319
        %v322 = vmul.f32 %v320, %v320
        %v323 = vld [vmem:[#allocation5] sm:$0xff]
        %v324 = vld [vmem:[#allocation5 + $0x8] sm:$0xff]
        %v325 = vld [vmem:[#allocation5 + $0x10] sm:$0xff]
        %v326 = vld [vmem:[#allocation5 + $0x18] sm:$0xff]
        %v327 = vld [vmem:[#allocation5 + $0x20] sm:$0xff]
        %v328 = vld [vmem:[#allocation5 + $0x28] sm:$0xff]
        %v329 = vld [vmem:[#allocation5 + $0x30] sm:$0xff]
        %v330 = vld [vmem:[#allocation5 + $0x38] sm:$0xff]
        %v331 = vld [vmem:[#allocation5 + $0x40] sm:$0xff]
        %v332 = vld [vmem:[#allocation5 + $0x48] sm:$0xff]
        %v333 = vld [vmem:[#allocation5 + $0x50] sm:$0xff]
        %v334 = vld [vmem:[#allocation5 + $0x58] sm:$0xff]
        %v335 = vld [vmem:[#allocation5 + $0x60] sm:$0xff]
        %v336 = vld [vmem:[#allocation5 + $0x68] sm:$0xff]
        %v337 = vld [vmem:[#allocation5 + $0x70] sm:$0xff]
        %v338 = vld [vmem:[#allocation5 + $0x78] sm:$0xff]
        %v339 = vld [vmem:[%s293] sm:$0x1]
        %v341 = vlaneseq
        %v342 = vshrl.u32 %v341, 7
        %v343 = vsub.s32 0, %v342
        %v344 = vrot.slane %v339, %v343
        %346 = vmatprep.subr.mxu0 0.0
        %347 = vmatpush1.msra.mxu0 %v323
        %348 = vmatprep.subr.mxu0 0.0
        %349 = vmatpush1.msra.mxu0 %v324
        %350 = vmatprep.subr.mxu0 0.0
        %351 = vmatpush1.msra.mxu0 %v325
        %352 = vmatprep.subr.mxu0 0.0
        %353 = vmatpush1.msra.mxu0 %v326
        %354 = vmatprep.subr.mxu0 0.0
        %355 = vmatpush1.msra.mxu0 %v327
        %356 = vmatprep.subr.mxu0 0.0
        %357 = vmatpush1.msra.mxu0 %v328
        %358 = vmatprep.subr.mxu0 0.0
        %359 = vmatpush1.msra.mxu0 %v329
        %360 = vmatprep.subr.mxu0 0.0
        %361 = vmatpush1.msra.mxu0 %v330
        %362 = vmatprep.subr.mxu0 0.0
        %363 = vmatpush1.msra.mxu0 %v331
        %364 = vmatprep.subr.mxu0 0.0
        %365 = vmatpush1.msra.mxu0 %v332
        %366 = vmatprep.subr.mxu0 0.0
        %367 = vmatpush1.msra.mxu0 %v333
        %368 = vmatprep.subr.mxu0 0.0
        %369 = vmatpush1.msra.mxu0 %v334
        %370 = vmatprep.subr.mxu0 0.0
        %371 = vmatpush1.msra.mxu0 %v335
        %372 = vmatprep.subr.mxu0 0.0
        %373 = vmatpush1.msra.mxu0 %v336
        %374 = vmatprep.subr.mxu0 0.0
        %375 = vmatpush1.msra.mxu0 %v337
        %376 = vmatprep.subr.mxu0 0.0
        %377 = vmatpush1.msra.mxu0 %v338
        %378 = vmatprep.subr.mxu0 0.0
        %379 = vmatpush1.msra.mxu0 0.0
        %380 = vmatprep.subr.mxu0 0.0
        %381 = vmatpush1.msra.mxu0 0.0
        %382 = vmatprep.subr.mxu0 0.0
        %383 = vmatpush1.msra.mxu0 0.0
        %384 = vmatprep.subr.mxu0 0.0
        %385 = vmatpush1.msra.mxu0 0.0
        %386 = vmatprep.subr.mxu0 0.0
        %387 = vmatpush1.msra.mxu0 0.0
        %388 = vmatprep.subr.mxu0 0.0
        %389 = vmatpush1.msra.mxu0 0.0
        %390 = vmatprep.subr.mxu0 0.0
        %391 = vmatpush1.msra.mxu0 0.0
        %392 = vmatprep.subr.mxu0 0.0
        %393 = vmatpush1.msra.mxu0 0.0
        %394 = vmatprep.subr.mxu0 0.0
        %395 = vmatpush1.msra.mxu0 0.0
        %396 = vmatprep.subr.mxu0 0.0
        %397 = vmatpush1.msra.mxu0 0.0
        %398 = vmatprep.subr.mxu0 0.0
        %399 = vmatpush1.msra.mxu0 0.0
        %400 = vmatprep.subr.mxu0 0.0
        %401 = vmatpush1.msra.mxu0 0.0
        %402 = vmatprep.subr.mxu0 0.0
        %403 = vmatpush1.msra.mxu0 0.0
        %404 = vmatprep.subr.mxu0 0.0
        %405 = vmatpush1.msra.mxu0 0.0
        %406 = vmatprep.subr.mxu0 0.0
        %407 = vmatpush1.msra.mxu0 0.0
        %408 = vmatprep.subr.mxu0 0.0
        %409 = vmatpush1.msra.mxu0 0.0
        %410 = vmatprep.mubr.f32.mxu0 0.0
        %411 = vmatmul.mubr.f32.gmra.mrb[0].mxu0 %v321
        %v412 = vpop.f32.mrb[0].mxu0
        %v413 = vadd.f32 %v344, %v412
        %v414 = vpop.f32.mrb[0].mxu0
        %415 = vmatprep.mubr.f32.mxu0 0.0
        %416 = vmatmul.mubr.f32.gmra.mrb[0].mxu0 %v322
        %v417 = vpop.f32.mrb[0].mxu0
        %v418 = vadd.f32 %v344, %v417
        %v419 = vpop.f32.mrb[0].mxu0
        %420 = vdwg.mxu0
        %421 = vst [vmem:[%s289] sm:$0xff] %v413
        %422 = vst [vmem:[%s289 + $0x8] sm:$0xff] %v418
        %s423 = sand.u32 %s165, 1
        %s424 = scalar_lea.sflag [#allocation4], %s423
        %s425 = sand.u32 %s165, 1
        %s426 = smul.addr %s425, 16
        %s427 = scalar_lea.vmem [#allocation7], %s426
        // Predicated region
        $region49: #{tpu_custom_call.1} parent=39 // pred_check
          %p428 = pneg %p175
        $region50: #{tpu_custom_call.1} parent=39 // pred_check_branch
          %430 = sbr.rel (%p428) target = $region52
        $region51: #{tpu_custom_call.1} parent=39 // pred_region
          %s431 = smul.u32 2, %s28
          %s433 = ssub.s32 256, 256
          %434 = vsyncadd %s424, %s433
          %s435 = sadd.s32 %s27, %s431
          %s436 = smul.addr %s435, 128
          %s437 = scalar_lea.hbm %s5, %s436
          %s438 = sshll.u32 %s427, 4
          %s439 = int_to_ptr.vmem [resolvable:$true] %s438
          %444 = dma.vmem_to_hbm [thread:$0]  %s439, 256, %s437, %s424, 128, 128, 8
        $region52: #{tpu_custom_call.1} parent=39 // pred_fallthru
          _
      $region40: #{tpu_custom_call.1} parent=5 // pred_fallthru
        _
      %p445 = scmp.le.s32.totalorder 2, %s18
      // Predicated region
      $region53: #{tpu_custom_call.1} parent=5 // pred_check
        %p446 = pneg %p445
      $region54: #{tpu_custom_call.1} parent=5 // pred_check_branch
        %448 = sbr.rel (%p446) target = $region56
      $region55: #{tpu_custom_call.1} parent=5 // pred_region
        %s449 = ssub.s32 %s18, 2
        // Predicated region
        $region57: #{tpu_custom_call.1} parent=55 // pred_check
          %p450 = pneg %p181
        $region58: #{tpu_custom_call.1} parent=55 // pred_check_branch
          %452 = sbr.rel (%p450) target = $region60
        $region59: #{tpu_custom_call.1} parent=55 // pred_region
          %s453 = sand.u32 %s166, 1
          %s454 = scalar_lea.sflag [#allocation4], %s453
          %s455 = sand.u32 %s166, 1
          %s456 = smul.addr %s455, 16
          %s457 = scalar_lea.vmem [#allocation7], %s456
          %458 = dma.done %s454, 256
        $region60: #{tpu_custom_call.1} parent=55 // pred_fallthru
          _
      $region56: #{tpu_custom_call.1} parent=5 // pred_fallthru
        _
    $region6: #{tpu_custom_call.1} parent=1 // loop_footer
      %s22 = sadd.s32 1, %s18
    $region7: #{tpu_custom_call.1} parent=1 // loop_footer_branch
      %17 = sbr.rel target = $region3
    $region8: #{tpu_custom_call.1} parent=1 // loop_exit
      _
    %459 = vsyncpa [#allocation3], 1
    %s460 = scalar_lea.sflag [#allocation3], 1
    %461 = vsyncpa %s460, 1
    %462 = vsyncpa [#allocation6], 1
    %463 = vsyncpa [#allocation4], 1
    %s464 = scalar_lea.sflag [#allocation4], 1
    %465 = vsyncpa %s464, 1

// kernel: tpu_custom_call.1
$region0: #{tpu_custom_call.1}
  #allocation0 [shape = 'u32[]', space=smem, size = 0x4, offset = 0x4, fixed_abs, tag = 'smem constant byte address 0x4 - core index']
  #allocation1 [shape = 'u32[144,128]{1,0:T(1,128)}', space=vmem, size = 0x12000, scoped, tag = 'internal scratch']
  %s0 = inlined_call_operand.hbm [shape: f32[48,128], index: 0, kind: input, shape index: {}]
  %s1 = inlined_call_operand.vmem [shape: f32[1,128], index: 1, kind: input, shape index: {}]
  %s2 = inlined_call_operand.vmem [shape: f32[1,128], index: 2, kind: input, shape index: {}]
  %s3 = inlined_call_operand.hbm [shape: f32[128,128], index: 3, kind: input, shape index: {}]
  %s4 = inlined_call_operand.vmem [shape: f32[1,128], index: 4, kind: input, shape index: {}]
  %s5 = inlined_call_operand.hbm [shape: f32[48,128], index: 5, kind: output, shape index: {}]
  %s6 = sld [smem:[#allocation0]]
  $region61: #{tpu_custom_call.1} parent=0
    _
  %s8 = ssub.s32 1, %s6
  %s9 = scalar_select 0, %s8, %s6
  $region1: #{tpu_custom_call.1} parent=0
    #allocation2 [shape = 'u8[16384]{0}', space=vmem, size = 0x4000, scoped, tag = 'input window, operand 0']
    #allocation3 [shape = 's32[2]{0}', space=sflag, size = 0x8, scoped, tag = 'scoped memory for tpu_custom_call.1']
    #allocation4 [shape = 's32[2]{0}', space=sflag, size = 0x8, scoped, tag = 'scoped memory for tpu_custom_call.1']
    #allocation5 [shape = 'u8[65536]{0}', space=vmem, size = 0x10000, scoped, tag = 'input window, operand 3, single buffered']
    #allocation6 [shape = 's32[1]{0}', space=sflag, size = 0x4, scoped, tag = 'scoped memory for tpu_custom_call.1']
    #allocation7 [shape = 'u8[16384]{0}', space=vmem, size = 0x4000, scoped, tag = 'output window, operand 0']
    %10 = vsyncpa [#allocation3], 0
    %s11 = scalar_lea.sflag [#allocation3], 1
    %12 = vsyncpa %s11, 0
    %13 = vsyncpa [#allocation6], 0
    %14 = vsyncpa [#allocation4], 0
    %s15 = scalar_lea.sflag [#allocation4], 1
    %16 = vsyncpa %s15, 0
    loop: start=0, step=1, limit=5
    $region2: #{tpu_custom_call.1} parent=1 // loop_pre_header
      _
    $region3: #{tpu_custom_call.1} parent=1 // loop_header
      %s18 = sphi 0, %s22
      %p19 = scmp.ge.s32.totalorder %s18, 5
      %s25 = sphi 0, %s37
      %s26 = sphi 0, %s33
      %s27 = sphi 0, %s25
      %s28 = sphi 0, %s26
      %s29 = sphi 0, %s27
      %s30 = sphi 0, %s28
      %s40 = sphi 0, %s42
      %s43 = sphi 0, %s40
      %s44 = sphi 0, %s43
      %s60 = sphi 0, %s44
      %s64 = sphi 0, %s64
      %s66 = sphi 0, %s64
      %s67 = sphi 0, %s66
      %s81 = sphi 0, %s67
      %s85 = sphi 0, %s85
      %s87 = sphi 0, %s85
      %s88 = sphi 0, %s87
      %s102 = sphi 0, %s88
      %s108 = sphi 0, %s110
      %s111 = sphi 0, %s108
      %s112 = sphi 0, %s111
      %s128 = sphi 0, %s112
      %s134 = sphi 0, %s136
      %s137 = sphi 0, %s134
      %s138 = sphi 0, %s137
      %s154 = sphi 0, %s138
      %s162 = sphi 0, %s164
      %s165 = sphi 0, %s162
      %s166 = sphi 0, %s165
      %s182 = sphi 0, %s166
    $region4: #{tpu_custom_call.1} parent=1 // loop_header_branch
      %21 = sbr.rel (%p19) target = $region8
    $region5: #{tpu_custom_call.1} parent=1 // loop_body
      %s23 = ssub.s32 %s18, 1
      %s24 = ssub.s32 %s18, 2
      %s31 = sadd.s32 1, %s26
      %p32 = scmp.ge.s32.totalorder %s31, 3
      %s33 = scalar_select %p32, 0, %s31
      %s34 = sadd.s32 1, %s25
      %s35 = scalar_select %p32, %s34, %s25
      %p36 = scmp.ge.s32.totalorder %s35, 1
      %s37 = scalar_select %p36, 0, %s35
      %s38 = ssub.s32 %s26, %s33
      %p39 = scmp.eq.s32.totalorder %s38, 0
      %s41 = sadd.s32 %s40, 1
      %s42 = scalar_select %p39, %s40, %s41
      %p45 = pneg %p39
      %p46 = scmp.eq.s32.totalorder %s18, 2
      %p47 = por %p45, %p46
      %p48 = scmp.ne.s32.totalorder %s40, %s43
      %p49 = scmp.eq.s32.totalorder %s18, 0
      %p50 = por %p48, %p49
      %p51 = scmp.ne.s32.totalorder %s40, %s43
      %p52 = scmp.eq.s32.totalorder %s23, 2
      %p53 = por %p51, %p52
      %p54 = scmp.ne.s32.totalorder %s43, %s44
      %p55 = scmp.eq.s32.totalorder %s23, 0
      %p56 = por %p54, %p55
      %p57 = scmp.ne.s32.totalorder %s43, %s44
      %p58 = scmp.eq.s32.totalorder %s24, 2
      %p59 = por %p57, %p58
      %p61 = scmp.ne.s32.totalorder %s44, %s60
      %p62 = scmp.eq.s32.totalorder %s24, 0
      %p63 = por %p61, %p62
      %s65 = sadd.s32 %s64, 1
      %p68 = scmp.eq.s32.totalorder %s18, 2
      %p69 = scmp.ne.s32.totalorder %s64, %s66
      %p70 = scmp.eq.s32.totalorder %s18, 0
      %p71 = por %p69, %p70
      %p72 = scmp.ne.s32.totalorder %s64, %s66
      %p73 = scmp.eq.s32.totalorder %s23, 2
      %p74 = por %p72, %p73
      %p75 = scmp.ne.s32.totalorder %s66, %s67
      %p76 = scmp.eq.s32.totalorder %s23, 0
      %p77 = por %p75, %p76
      %p78 = scmp.ne.s32.totalorder %s66, %s67
      %p79 = scmp.eq.s32.totalorder %s24, 2
      %p80 = por %p78, %p79
      %p82 = scmp.ne.s32.totalorder %s67, %s81
      %p83 = scmp.eq.s32.totalorder %s24, 0
      %p84 = por %p82, %p83
      %s86 = sadd.s32 %s85, 1
      %p89 = scmp.eq.s32.totalorder %s18, 2
      %p90 = scmp.ne.s32.totalorder %s85, %s87
      %p91 = scmp.eq.s32.totalorder %s18, 0
      %p92 = por %p90, %p91
      %p93 = scmp.ne.s32.totalorder %s85, %s87
      %p94 = scmp.eq.s32.totalorder %s23, 2
      %p95 = por %p93, %p94
      %p96 = scmp.ne.s32.totalorder %s87, %s88
      %p97 = scmp.eq.s32.totalorder %s23, 0
      %p98 = por %p96, %p97
      %p99 = scmp.ne.s32.totalorder %s87, %s88
      %p100 = scmp.eq.s32.totalorder %s24, 2
      %p101 = por %p99, %p100
      %p103 = scmp.ne.s32.totalorder %s88, %s102
      %p104 = scmp.eq.s32.totalorder %s24, 0
      %p105 = por %p103, %p104
      %s106 = ssub.s32 %s25, %s37
      %p107 = scmp.eq.s32.totalorder %s106, 0
      %s109 = sadd.s32 %s108, 1
      %s110 = scalar_select %p107, %s108, %s109
      %p113 = pneg %p107
      %p114 = scmp.eq.s32.totalorder %s18, 2
      %p115 = por %p113, %p114
      %p116 = scmp.ne.s32.totalorder %s108, %s111
      %p117 = scmp.eq.s32.totalorder %s18, 0
      %p118 = por %p116, %p117
      %p119 = scmp.ne.s32.totalorder %s108, %s111
      %p120 = scmp.eq.s32.totalorder %s23, 2
      %p121 = por %p119, %p120
      %p122 = scmp.ne.s32.totalorder %s111, %s112
      %p123 = scmp.eq.s32.totalorder %s23, 0
      %p124 = por %p122, %p123
      %p125 = scmp.ne.s32.totalorder %s111, %s112
      %p126 = scmp.eq.s32.totalorder %s24, 2
      %p127 = por %p125, %p126
      %p129 = scmp.ne.s32.totalorder %s112, %s128
      %p130 = scmp.eq.s32.totalorder %s24, 0
      %p131 = por %p129, %p130
      %s132 = ssub.s32 %s25, %s37
      %p133 = scmp.eq.s32.totalorder %s132, 0
      %s135 = sadd.s32 %s134, 1
      %s136 = scalar_select %p133, %s134, %s135
      %p139 = pneg %p133
      %p140 = scmp.eq.s32.totalorder %s18, 2
      %p141 = por %p139, %p140
      %p142 = scmp.ne.s32.totalorder %s134, %s137
      %p143 = scmp.eq.s32.totalorder %s18, 0
      %p144 = por %p142, %p143
      %p145 = scmp.ne.s32.totalorder %s134, %s137
      %p146 = scmp.eq.s32.totalorder %s23, 2
      %p147 = por %p145, %p146
      %p148 = scmp.ne.s32.totalorder %s137, %s138
      %p149 = scmp.eq.s32.totalorder %s23, 0
      %p150 = por %p148, %p149
      %p151 = scmp.ne.s32.totalorder %s137, %s138
      %p152 = scmp.eq.s32.totalorder %s24, 2
      %p153 = por %p151, %p152
      %p155 = scmp.ne.s32.totalorder %s138, %s154
      %p156 = scmp.eq.s32.totalorder %s24, 0
      %p157 = por %p155, %p156
      %s158 = ssub.s32 %s26, %s33
      %s159 = ssub.s32 %s25, %s37
      %s160 = sor.u32 %s158, %s159
      %p161 = scmp.eq.s32.totalorder %s160, 0
      %s163 = sadd.s32 %s162, 1
      %s164 = scalar_select %p161, %s162, %s163
      %p167 = pneg %p161
      %p168 = scmp.eq.s32.totalorder %s18, 2
      %p169 = por %p167, %p168
      %p170 = scmp.ne.s32.totalorder %s162, %s165
      %p171 = scmp.eq.s32.totalorder %s18, 0
      %p172 = por %p170, %p171
      %p173 = scmp.ne.s32.totalorder %s162, %s165
      %p174 = scmp.eq.s32.totalorder %s23, 2
      %p175 = por %p173, %p174
      %p176 = scmp.ne.s32.totalorder %s165, %s166
      %p177 = scmp.eq.s32.totalorder %s23, 0
      %p178 = por %p176, %p177
      %p179 = scmp.ne.s32.totalorder %s165, %s166
      %p180 = scmp.eq.s32.totalorder %s24, 2
      %p181 = por %p179, %p180
      %p183 = scmp.ne.s32.totalorder %s166, %s182
      %p184 = scmp.eq.s32.totalorder %s24, 0
      %p185 = por %p183, %p184
      %p186 = scmp.le.s32.totalorder 1, %s18
      %p187 = scmp.lt.s32.totalorder %s18, 4
      %p188 = pnand %p186, %p187
      %p189 = pneg %p188
      // Predicated region
      $region9: #{tpu_custom_call.1} parent=5 // pred_check
        _
      $region10: #{tpu_custom_call.1} parent=5 // pred_check_branch
        %191 = sbr.rel (%p188) target = $region12
      $region11: #{tpu_custom_call.1} parent=5 // pred_region
        %s192 = ssub.s32 %s18, 1
        // Predicated region
        $region13: #{tpu_custom_call.1} parent=11 // pred_check
          %p193 = pneg %p77
        $region14: #{tpu_custom_call.1} parent=11 // pred_check_branch
          %195 = sbr.rel (%p193) target = $region16
        $region15: #{tpu_custom_call.1} parent=11 // pred_region
          _
        $region16: #{tpu_custom_call.1} parent=11 // pred_fallthru
          _
        // Predicated region
        $region17: #{tpu_custom_call.1} parent=11 // pred_check
          %p196 = pneg %p98
        $region18: #{tpu_custom_call.1} parent=11 // pred_check_branch
          %198 = sbr.rel (%p196) target = $region20
        $region19: #{tpu_custom_call.1} parent=11 // pred_region
          _
        $region20: #{tpu_custom_call.1} parent=11 // pred_fallthru
          _
        // Predicated region
        $region21: #{tpu_custom_call.1} parent=11 // pred_check
          %p199 = pneg %p124
        $region22: #{tpu_custom_call.1} parent=11 // pred_check_branch
          %201 = sbr.rel (%p199) target = $region24
        $region23: #{tpu_custom_call.1} parent=11 // pred_region
          %s203 = ssub.s32 2048, 2048
          %204 = vsyncadd [#allocation6], %s203
          %s205 = smul.addr %s27, 128
          %s206 = scalar_lea.hbm %s3, %s205
          %s207 = sshll.u32 [#allocation5], 4
          %s208 = int_to_ptr.vmem [resolvable:$true] %s207
          %213 = dma.hbm_to_vmem [thread:$0]  %s206, 2048, %s208, [#allocation6], 128, 128, 8
        $region24: #{tpu_custom_call.1} parent=11 // pred_fallthru
          _
        // Predicated region
        $region25: #{tpu_custom_call.1} parent=11 // pred_check
          %p214 = pneg %p150
        $region26: #{tpu_custom_call.1} parent=11 // pred_check_branch
          %216 = sbr.rel (%p214) target = $region28
        $region27: #{tpu_custom_call.1} parent=11 // pred_region
          %p217 = scmp.lt.s32.totalorder %s27, 0
          %s218 = scalar_select %p217, %s27, 0
          %s219 = scalar_lea.vmem %s4, %s218
        $region28: #{tpu_custom_call.1} parent=11 // pred_fallthru
          _
      $region12: #{tpu_custom_call.1} parent=5 // pred_fallthru
        _
      %p220 = scmp.lt.s32.totalorder %s18, 3
      // Predicated region
      $region29: #{tpu_custom_call.1} parent=5 // pred_check
        %p221 = pneg %p220
      $region30: #{tpu_custom_call.1} parent=5 // pred_check_branch
        %223 = sbr.rel (%p221) target = $region32
      $region31: #{tpu_custom_call.1} parent=5 // pred_region
        // Predicated region
        $region33: #{tpu_custom_call.1} parent=31 // pred_check
          %p224 = pneg %p50
        $region34: #{tpu_custom_call.1} parent=31 // pred_check_branch
          %226 = sbr.rel (%p224) target = $region36
        $region35: #{tpu_custom_call.1} parent=31 // pred_region
          %s227 = sand.u32 %s40, 1
          %s228 = scalar_lea.sflag [#allocation3], %s227
          %s229 = sand.u32 %s40, 1
          %s230 = smul.addr %s229, 16
          %s231 = scalar_lea.vmem [#allocation2], %s230
          %s232 = smul.u32 2, %s26
          %s234 = ssub.s32 256, 256
          %235 = vsyncadd %s228, %s234
          %s236 = smul.addr %s232, 128
          %s237 = scalar_lea.hbm %s0, %s236
          %s238 = sshll.u32 %s231, 4
          %s239 = int_to_ptr.vmem [resolvable:$true] %s238
          %244 = dma.hbm_to_vmem [thread:$0]  %s237, 256, %s239, %s228, 128, 128, 8
        $region36: #{tpu_custom_call.1} parent=31 // pred_fallthru
          _
      $region32: #{tpu_custom_call.1} parent=5 // pred_fallthru
        _
      %p245 = scmp.le.s32.totalorder 1, %s18
      %p246 = scmp.lt.s32.totalorder %s18, 4
      %p247 = pnand %p245, %p246
      %p248 = pneg %p247
      // Predicated region
      $region37: #{tpu_custom_call.1} parent=5 // pred_check
        _
      $region38: #{tpu_custom_call.1} parent=5 // pred_check_branch
        %250 = sbr.rel (%p247) target = $region40
      $region39: #{tpu_custom_call.1} parent=5 // pred_region
        %s251 = ssub.s32 %s18, 1
        %s252 = sand.u32 %s43, 1
        %s253 = scalar_lea.sflag [#allocation3], %s252
        %s254 = sand.u32 %s43, 1
        %s255 = smul.addr %s254, 16
        %s256 = scalar_lea.vmem [#allocation2], %s255
        // Predicated region
        $region41: #{tpu_custom_call.1} parent=39 // pred_check
          %p257 = pneg %p56
        $region42: #{tpu_custom_call.1} parent=39 // pred_check_branch
          %259 = sbr.rel (%p257) target = $region44
        $region43: #{tpu_custom_call.1} parent=39 // pred_region
          %260 = dma.done %s253, 256
        $region44: #{tpu_custom_call.1} parent=39 // pred_fallthru
          _
        // Predicated region
        $region45: #{tpu_custom_call.1} parent=39 // pred_check
          %p261 = pneg %p124
        $region46: #{tpu_custom_call.1} parent=39 // pred_check_branch
          %263 = sbr.rel (%p261) target = $region48
        $region47: #{tpu_custom_call.1} parent=39 // pred_region
          %264 = dma.done [#allocation6], 2048
        $region48: #{tpu_custom_call.1} parent=39 // pred_fallthru
          _
        %s265 = sand.u32 %s43, 1
        %s266 = scalar_lea.sflag [#allocation3], %s265
        %s267 = sand.u32 %s43, 1
        %s268 = smul.addr %s267, 16
        %s269 = scalar_lea.vmem [#allocation2], %s268
        %p270 = pneg %p56
        %p271 = pneg %p53
        %p272 = pneg %p77
        %p273 = pneg %p74
        %p274 = pneg %p98
        %p275 = pneg %p95
        %p276 = pneg %p124
        %p277 = pneg %p121
        %p278 = scmp.lt.s32.totalorder %s27, 0
        %s279 = scalar_select %p278, %s27, 0
        %s280 = scalar_lea.vmem %s4, %s279
        %p281 = pneg %p150
        %p282 = pneg %p147
        %p283 = pneg %p178
        %p284 = pneg %p175
        %s285 = sand.u32 %s165, 1
        %s286 = scalar_lea.sflag [#allocation4], %s285
        %s287 = sand.u32 %s165, 1
        %s288 = smul.addr %s287, 16
        %s289 = scalar_lea.vmem [#allocation7], %s288
        %s290 = smul.u32 2, %s28
        %p291 = scmp.lt.s32.totalorder %s27, 0
        %s292 = scalar_select %p291, %s27, 0
        %s293 = scalar_lea.vmem %s4, %s292
        %s294 = smul.u32 2, %s28
        %v295 = vld [vmem:[%s256] sm:$0xff]
        %v296 = vld [vmem:[%s256 + $0x8] sm:$0xff]
        %v297 = vld [vmem:[%s1] sm:$0x1]
        %v299 = vlaneseq
        %v300 = vshrl.u32 %v299, 7
        %v301 = vsub.s32 0, %v300
        %v302 = vrot.slane %v297, %v301
        %v304 = vsub.f32 %v295, %v302
        %v305 = vsub.f32 %v296, %v302
        %v306 = vmax.f32 %v304, 0.0
        %v307 = vmax.f32 %v305, 0.0
        %v308 = vld [vmem:[%s2] sm:$0x1]
        %v310 = vlaneseq
        %v311 = vshrl.u32 %v310, 7
        %v312 = vsub.s32 0, %v311
        %v313 = vrot.slane %v308, %v312
        %v315 = vsub.f32 %v313, %v295
        %v316 = vsub.f32 %v313, %v296
        %v317 = vmax.f32 %v315, 0.0
        %v318 = vmax.f32 %v316, 0.0
        %v319 = vmul.f32 %v306, %v317
        %v320 = vmul.f32 %v307, %v318
        %v321 = vmul.f32 %v319, %v319
        %v322 = vmul.f32 %v320, %v320
        %v323 = vld [vmem:[#allocation5] sm:$0xff]
        %v324 = vld [vmem:[#allocation5 + $0x8] sm:$0xff]
        %v325 = vld [vmem:[#allocation5 + $0x10] sm:$0xff]
        %v326 = vld [vmem:[#allocation5 + $0x18] sm:$0xff]
        %v327 = vld [vmem:[#allocation5 + $0x20] sm:$0xff]
        %v328 = vld [vmem:[#allocation5 + $0x28] sm:$0xff]
        %v329 = vld [vmem:[#allocation5 + $0x30] sm:$0xff]
        %v330 = vld [vmem:[#allocation5 + $0x38] sm:$0xff]
        %v331 = vld [vmem:[#allocation5 + $0x40] sm:$0xff]
        %v332 = vld [vmem:[#allocation5 + $0x48] sm:$0xff]
        %v333 = vld [vmem:[#allocation5 + $0x50] sm:$0xff]
        %v334 = vld [vmem:[#allocation5 + $0x58] sm:$0xff]
        %v335 = vld [vmem:[#allocation5 + $0x60] sm:$0xff]
        %v336 = vld [vmem:[#allocation5 + $0x68] sm:$0xff]
        %v337 = vld [vmem:[#allocation5 + $0x70] sm:$0xff]
        %v338 = vld [vmem:[#allocation5 + $0x78] sm:$0xff]
        %v339 = vld [vmem:[%s293] sm:$0x1]
        %v341 = vlaneseq
        %v342 = vshrl.u32 %v341, 7
        %v343 = vsub.s32 0, %v342
        %v344 = vrot.slane %v339, %v343
        %346 = vmatprep.subr.mxu0 0.0
        %347 = vmatpush1.msra.mxu0 %v323
        %348 = vmatprep.subr.mxu0 0.0
        %349 = vmatpush1.msra.mxu0 %v324
        %350 = vmatprep.subr.mxu0 0.0
        %351 = vmatpush1.msra.mxu0 %v325
        %352 = vmatprep.subr.mxu0 0.0
        %353 = vmatpush1.msra.mxu0 %v326
        %354 = vmatprep.subr.mxu0 0.0
        %355 = vmatpush1.msra.mxu0 %v327
        %356 = vmatprep.subr.mxu0 0.0
        %357 = vmatpush1.msra.mxu0 %v328
        %358 = vmatprep.subr.mxu0 0.0
        %359 = vmatpush1.msra.mxu0 %v329
        %360 = vmatprep.subr.mxu0 0.0
        %361 = vmatpush1.msra.mxu0 %v330
        %362 = vmatprep.subr.mxu0 0.0
        %363 = vmatpush1.msra.mxu0 %v331
        %364 = vmatprep.subr.mxu0 0.0
        %365 = vmatpush1.msra.mxu0 %v332
        %366 = vmatprep.subr.mxu0 0.0
        %367 = vmatpush1.msra.mxu0 %v333
        %368 = vmatprep.subr.mxu0 0.0
        %369 = vmatpush1.msra.mxu0 %v334
        %370 = vmatprep.subr.mxu0 0.0
        %371 = vmatpush1.msra.mxu0 %v335
        %372 = vmatprep.subr.mxu0 0.0
        %373 = vmatpush1.msra.mxu0 %v336
        %374 = vmatprep.subr.mxu0 0.0
        %375 = vmatpush1.msra.mxu0 %v337
        %376 = vmatprep.subr.mxu0 0.0
        %377 = vmatpush1.msra.mxu0 %v338
        %378 = vmatprep.subr.mxu0 0.0
        %379 = vmatpush1.msra.mxu0 0.0
        %380 = vmatprep.subr.mxu0 0.0
        %381 = vmatpush1.msra.mxu0 0.0
        %382 = vmatprep.subr.mxu0 0.0
        %383 = vmatpush1.msra.mxu0 0.0
        %384 = vmatprep.subr.mxu0 0.0
        %385 = vmatpush1.msra.mxu0 0.0
        %386 = vmatprep.subr.mxu0 0.0
        %387 = vmatpush1.msra.mxu0 0.0
        %388 = vmatprep.subr.mxu0 0.0
        %389 = vmatpush1.msra.mxu0 0.0
        %390 = vmatprep.subr.mxu0 0.0
        %391 = vmatpush1.msra.mxu0 0.0
        %392 = vmatprep.subr.mxu0 0.0
        %393 = vmatpush1.msra.mxu0 0.0
        %394 = vmatprep.subr.mxu0 0.0
        %395 = vmatpush1.msra.mxu0 0.0
        %396 = vmatprep.subr.mxu0 0.0
        %397 = vmatpush1.msra.mxu0 0.0
        %398 = vmatprep.subr.mxu0 0.0
        %399 = vmatpush1.msra.mxu0 0.0
        %400 = vmatprep.subr.mxu0 0.0
        %401 = vmatpush1.msra.mxu0 0.0
        %402 = vmatprep.subr.mxu0 0.0
        %403 = vmatpush1.msra.mxu0 0.0
        %404 = vmatprep.subr.mxu0 0.0
        %405 = vmatpush1.msra.mxu0 0.0
        %406 = vmatprep.subr.mxu0 0.0
        %407 = vmatpush1.msra.mxu0 0.0
        %408 = vmatprep.subr.mxu0 0.0
        %409 = vmatpush1.msra.mxu0 0.0
        %410 = vmatprep.mubr.f32.mxu0 0.0
        %411 = vmatmul.mubr.f32.gmra.mrb[0].mxu0 %v321
        %v412 = vpop.f32.mrb[0].mxu0
        %v413 = vadd.f32 %v344, %v412
        %v414 = vpop.f32.mrb[0].mxu0
        %415 = vmatprep.mubr.f32.mxu0 0.0
        %416 = vmatmul.mubr.f32.gmra.mrb[0].mxu0 %v322
        %v417 = vpop.f32.mrb[0].mxu0
        %v418 = vadd.f32 %v344, %v417
        %v419 = vpop.f32.mrb[0].mxu0
        %420 = vdwg.mxu0
        %421 = vst [vmem:[%s289] sm:$0xff] %v413
        %422 = vst [vmem:[%s289 + $0x8] sm:$0xff] %v418
        %s423 = sand.u32 %s165, 1
        %s424 = scalar_lea.sflag [#allocation4], %s423
        %s425 = sand.u32 %s165, 1
        %s426 = smul.addr %s425, 16
        %s427 = scalar_lea.vmem [#allocation7], %s426
        // Predicated region
        $region49: #{tpu_custom_call.1} parent=39 // pred_check
          %p428 = pneg %p175
        $region50: #{tpu_custom_call.1} parent=39 // pred_check_branch
          %430 = sbr.rel (%p428) target = $region52
        $region51: #{tpu_custom_call.1} parent=39 // pred_region
          %s431 = smul.u32 2, %s28
          %s433 = ssub.s32 256, 256
          %434 = vsyncadd %s424, %s433
          %s435 = sadd.s32 %s27, %s431
          %s436 = smul.addr %s435, 128
          %s437 = scalar_lea.hbm %s5, %s436
          %s438 = sshll.u32 %s427, 4
          %s439 = int_to_ptr.vmem [resolvable:$true] %s438
          %444 = dma.vmem_to_hbm [thread:$0]  %s439, 256, %s437, %s424, 128, 128, 8
        $region52: #{tpu_custom_call.1} parent=39 // pred_fallthru
          _
      $region40: #{tpu_custom_call.1} parent=5 // pred_fallthru
        _
      %p445 = scmp.le.s32.totalorder 2, %s18
      // Predicated region
      $region53: #{tpu_custom_call.1} parent=5 // pred_check
        %p446 = pneg %p445
      $region54: #{tpu_custom_call.1} parent=5 // pred_check_branch
        %448 = sbr.rel (%p446) target = $region56
      $region55: #{tpu_custom_call.1} parent=5 // pred_region
        %s449 = ssub.s32 %s18, 2
        // Predicated region
        $region57: #{tpu_custom_call.1} parent=55 // pred_check
          %p450 = pneg %p181
        $region58: #{tpu_custom_call.1} parent=55 // pred_check_branch
          %452 = sbr.rel (%p450) target = $region60
        $region59: #{tpu_custom_call.1} parent=55 // pred_region
          %s453 = sand.u32 %s166, 1
          %s454 = scalar_lea.sflag [#allocation4], %s453
          %s455 = sand.u32 %s166, 1
          %s456 = smul.addr %s455, 16
          %s457 = scalar_lea.vmem [#allocation7], %s456
          %458 = dma.done %s454, 256
        $region60: #{tpu_custom_call.1} parent=55 // pred_fallthru
          _
      $region56: #{tpu_custom_call.1} parent=5 // pred_fallthru
        _
    $region6: #{tpu_custom_call.1} parent=1 // loop_footer
      %s22 = sadd.s32 1, %s18
    $region7: #{tpu_custom_call.1} parent=1 // loop_footer_branch
      %17 = sbr.rel target = $region3
    $region8: #{tpu_custom_call.1} parent=1 // loop_exit
      _
    %459 = vsyncpa [#allocation3], 1
    %s460 = scalar_lea.sflag [#allocation3], 1
    %461 = vsyncpa %s460, 1
    %462 = vsyncpa [#allocation6], 1
    %463 = vsyncpa [#allocation4], 1
    %s464 = scalar_lea.sflag [#allocation4], 1
    %465 = vsyncpa %s464, 1

</llo_original>
